<compile_context>
chip_gen: v5e
topology: v5e:2x2
jax: 0.10.0
libtpu: 0.0.40
codegen_flags: <defaults>
</compile_context>

<pallas_src>
import functools

import jax
import jax.numpy as jnp
from jax.experimental import pallas as pl
from jax.experimental.pallas import tpu as pltpu


def _cdiv(a, b):
    return -(-a // b)


def _round_up(a, b):
    return _cdiv(a, b) * b


def _tpu_generation():
    try:
        kind = jax.devices()[0].device_kind.lower()
    except Exception:
        return "unknown"
    if "7" in kind:
        return "v7x"
    if "v6" in kind:
        return "v6e"
    if "v5e" in kind or "v5 lite" in kind or "v5lite" in kind:
        return "v5e"
    return "unknown"


# tile_bytes: target per-tile VMEM footprint; vmem_cap: max scoped VMEM we will
# request (stays well under physical: 64 MiB on v7x, 128 MiB on v5e/v6e).
_GEN_CONFIG = {
    "v7x": dict(tile_bytes=8 << 20, vmem_cap=56 << 20, two_cores=True),
    "v6e": dict(tile_bytes=8 << 20, vmem_cap=100 << 20, two_cores=False),
    "v5e": dict(tile_bytes=2 << 20, vmem_cap=100 << 20, two_cores=False),
    "unknown": dict(tile_bytes=2 << 20, vmem_cap=56 << 20, two_cores=False),
}


def exp_model_kernel(params_ref, x_ref, o_ref, *, compute_dtype):
    # params_ref: SMEM (2,) f32 -> [a, b]
    a = params_ref[0].astype(compute_dtype)
    b = params_ref[1].astype(compute_dtype)
    xv = x_ref[...].astype(compute_dtype)
    o_ref[...] = (a * jnp.exp(b * xv)).astype(o_ref.dtype)


def exp_model_forward(x, a, b):
    """Computes a * exp(b * x) for arbitrary-shaped x via a Pallas TPU kernel."""
    orig_shape = x.shape
    if not jnp.issubdtype(x.dtype, jnp.floating):
        # Integer inputs would silently truncate on the cast-back path; promote.
        x = x.astype(jnp.float32)
    out_dtype = x.dtype

    gen = _tpu_generation()
    cfg = _GEN_CONFIG[gen]

    flat = x.reshape(-1)
    n = flat.shape[0]

    # Adaptive lane width: avoid pad + slice (each a full HBM read+write pass)
    # whenever n is already a multiple of a legal lane width.
    lane = None
    for cand in (512, 256, 128):
        if n % cand == 0:
            lane = cand
            break
    pad = 0
    if lane is None:
        lane = 128
        pad = (-n) % lane
        flat = jnp.pad(flat, (0, pad))
    m = flat.shape[0] // lane
    x2d = flat.reshape(m, lane)

    itemsize = jnp.dtype(out_dtype).itemsize
    row_bytes = lane * itemsize
    tile_rows = max(8, (cfg["tile_bytes"] // row_bytes) // 8 * 8)

    # Block rows: full row count for small inputs (full-dim block is legal even
    # if not a multiple of 8), otherwise the large 8-aligned tile.
    block_rows = m if m <= tile_rows else tile_rows

    # v7x megacore: keep the 1-D "parallel" grid even so both TCs stay busy.
    if cfg["two_cores"] and m >= 16:
        grid0 = _cdiv(m, block_rows)
        if grid0 % 2 != 0:
            cand_rows = max(8, _round_up(_cdiv(m, grid0 + 1), 8))
            if _cdiv(m, cand_rows) % 2 == 0:
                block_rows = cand_rows

    grid0 = _cdiv(m, block_rows)

    # bf16 compute on v6e/v7x (bf16 VPU/EUP); v5e and everything else in f32.
    if out_dtype == jnp.bfloat16 and gen in ("v6e", "v7x"):
        compute_dtype = jnp.bfloat16
    else:
        compute_dtype = jnp.float32

    params = jnp.stack(
        [jnp.asarray(a, jnp.float32), jnp.asarray(b, jnp.float32)]
    )

    total = m * lane
    cost = pl.CostEstimate(
        flops=2 * total,
        transcendentals=total,
        bytes_accessed=2 * total * itemsize,
    )

    tile_bytes = block_rows * row_bytes
    # 2 input + 2 output buffers (double-buffered) + compiler scratch headroom.
    vmem_limit = min(cfg["vmem_cap"], max(32 << 20, 4 * tile_bytes + (8 << 20)))

    kernel = functools.partial(exp_model_kernel, compute_dtype=compute_dtype)

    out2d = pl.pallas_call(
        kernel,
        out_shape=jax.ShapeDtypeStruct((m, lane), out_dtype),
        grid_spec=pltpu.PrefetchScalarGridSpec(
            num_scalar_prefetch=1,
            grid=(grid0,),
            in_specs=[
                pl.BlockSpec((block_rows, lane), lambda i, p_ref: (i, 0)),
            ],
            out_specs=pl.BlockSpec((block_rows, lane), lambda i, p_ref: (i, 0)),
        ),
        compiler_params=pltpu.CompilerParams(
            # "parallel" shards the 1-D grid across v7x's 2 TensorCores;
            # no-op on single-core v5e/v6e.
            dimension_semantics=("parallel",),
            vmem_limit_bytes=vmem_limit,
        ),
        cost_estimate=cost,
    )(params, x2d)

    out_flat = out2d.reshape(-1)
    if pad:
        out_flat = out_flat[:n]
    return out_flat.reshape(orig_shape)


if __name__ == "__main__":
    key = jax.random.PRNGKey(0)

    # Module inits a=0.0, b=0.0; use small nonzero values so the exp path is
    # exercised meaningfully.
    a = jnp.float32(0.5)
    b = jnp.float32(0.1)

    # Small NCHW-like input consistent with the elementwise forward.
    x = jax.random.normal(key, (2, 4, 16, 16), dtype=jnp.float32)

    out = exp_model_forward(x, a, b)
    out = jax.block_until_ready(out)

    ref = a * jnp.exp(b * x)
    assert out.shape == x.shape
    assert out.dtype == x.dtype
    assert jnp.allclose(out, ref, atol=1e-5, rtol=1e-5)

    # Ragged-shape path (n not a multiple of 128 -> pad path, lane=128).
    x2 = jax.random.normal(jax.random.PRNGKey(1), (3, 5, 7), dtype=jnp.float32)
    out2 = jax.block_until_ready(exp_model_forward(x2, a, b))
    ref2 = a * jnp.exp(b * x2)
    assert out2.shape == x2.shape
    assert jnp.allclose(out2, ref2, atol=1e-5, rtol=1e-5)

    print("KERNEL_OK")
</pallas_src>

<mosaic_0001>
module attributes {stable_mosaic.version = 11 : i64} {
  func.func @exp_model_kernel(%arg0: i32, %arg1: memref<2xf32, #tpu.memory_space<smem>>, %arg2: memref<4x512xf32, #tpu.memory_space<vmem>>, %arg3: memref<4x512xf32, #tpu.memory_space<vmem>>) attributes {dimension_semantics = [#tpu.dimension_semantics<parallel>], iteration_bounds = array<i64: 1>, scalar_prefetch = 1 : i64, scratch_operands = 0 : i64, tpu.core_type = #tpu.core_type<tc>, window_params = [{transform_indices = @transform_0, window_bounds = array<i64: 4, 512>}, {transform_indices = @transform_1, window_bounds = array<i64: 4, 512>}]} {
    %c0 = arith.constant 0 : index
    %0 = memref.load %arg1[%c0] : memref<2xf32, #tpu.memory_space<smem>>
    %c1 = arith.constant 1 : index
    %1 = memref.load %arg1[%c1] : memref<2xf32, #tpu.memory_space<smem>>
    %c0_0 = arith.constant 0 : index
    %c0_1 = arith.constant 0 : index
    %2 = vector.load %arg2[%c0_0, %c0_1] : memref<4x512xf32, #tpu.memory_space<vmem>>, vector<4x512xf32>
    %3 = vector.broadcast %1 : f32 to vector<4x512xf32>
    %4 = arith.mulf %3, %2 : vector<4x512xf32>
    %5 = math.exp %4 : vector<4x512xf32>
    %6 = vector.broadcast %0 : f32 to vector<4x512xf32>
    %7 = arith.mulf %6, %5 : vector<4x512xf32>
    %c0_2 = arith.constant 0 : index
    %c0_3 = arith.constant 0 : index
    %8 = vector.load %arg3[%c0_2, %c0_3] : memref<4x512xf32, #tpu.memory_space<vmem>>, vector<4x512xf32>
    tpu.vector_store %arg3[%c0_2, %c0_3], %7 {strides = array<i32>} : memref<4x512xf32, #tpu.memory_space<vmem>>, vector<4x512xf32>,
    return
  }
  func.func @transform_0(%arg0: i32, %arg1: memref<2xf32, #tpu.memory_space<smem>>) -> (i32, i32) {
    %c0_i32 = arith.constant 0 : i32
    %c0_i32_0 = arith.constant 0 : i32
    return %arg0, %c0_i32 : i32, i32
  }
  func.func @transform_1(%arg0: i32, %arg1: memref<2xf32, #tpu.memory_space<smem>>) -> (i32, i32) {
    %c0_i32 = arith.constant 0 : i32
    %c0_i32_0 = arith.constant 0 : i32
    return %arg0, %c0_i32 : i32, i32
  }
}

</mosaic_0001>

<llo_original>
// kernel: tpu_custom_call.1
$region0: #{tpu_custom_call.1}
  #allocation0 [shape = 'u32[]', space=smem, size = 0x4, offset = 0x4, fixed_abs, tag = 'smem constant byte address 0x4 - core index']
  #allocation1 [shape = 'u32[72,128]{1,0:T(1,128)}', space=vmem, size = 0x9000, scoped, tag = 'internal scratch']
  #allocation2 [shape = 's32[1]{0}', space=sflag, size = 0x4, scoped, tag = 'scoped memory for tpu_custom_call.1']
  #allocation3 [shape = 'u8[512]{0}', space=smem, size = 0x200, scoped, tag = 'prefetched SMEM operand 0']
  %s0 = inlined_call_operand.hbm [shape: f32[2], index: 0, kind: input, shape index: {}]
  %s1 = inlined_call_operand.hbm [shape: f32[4,512], index: 1, kind: input, shape index: {}]
  %s2 = inlined_call_operand.hbm [shape: f32[4,512], index: 2, kind: output, shape index: {}]
  %s3 = sld [smem:[#allocation0]]
  $region18: #{tpu_custom_call.1} parent=0
    _
  %s5 = ssub.s32 1, %s3
  %s6 = scalar_select 0, %s5, %s3
  %s8 = sshll.u32 %s0, 4
  %s9 = int_to_ptr.hbm [resolvable:$true] %s8
  %11 = dma.hbm_to_smem %s9, 16, [#allocation3], [#allocation2]
  %13 = dma.done [#allocation2], 16
  %14 = sfence
  $region1: #{tpu_custom_call.1} parent=0
    #allocation4 [shape = 'u8[8192]{0}', space=vmem, size = 0x2000, scoped, tag = 'input window, operand 1, single buffered']
    #allocation5 [shape = 's32[1]{0}', space=sflag, size = 0x4, scoped, tag = 'scoped memory for tpu_custom_call.1']
    #allocation6 [shape = 's32[1]{0}', space=sflag, size = 0x4, scoped, tag = 'scoped memory for tpu_custom_call.1']
    #allocation7 [shape = 'u8[8192]{0}', space=vmem, size = 0x2000, scoped, tag = 'output window, operand 0, single buffered']
    %15 = vsyncpa [#allocation5], 0
    %16 = vsyncpa [#allocation6], 0
    // Predicated region
    $region2: #{tpu_custom_call.1} parent=1 // pred_check
      _
    $region3: #{tpu_custom_call.1} parent=1 // pred_check_branch
      %18 = sbr.rel (0) target = $region5
    $region4: #{tpu_custom_call.1} parent=1 // pred_region
      %20 = vsyncadd [#allocation5], 0
      %s22 = sshll.u32 %s1, 4
      %s23 = int_to_ptr.hbm [resolvable:$true] %s22
      %s24 = sshll.u32 [#allocation4], 4
      %s25 = int_to_ptr.vmem [resolvable:$true] %s24
      %27 = dma.hbm_to_vmem [thread:$0]  %s23, 256, %s25, [#allocation5]
    $region5: #{tpu_custom_call.1} parent=1 // pred_fallthru
      _
    // Predicated region
    $region6: #{tpu_custom_call.1} parent=1 // pred_check
      _
    $region7: #{tpu_custom_call.1} parent=1 // pred_check_branch
      %29 = sbr.rel (0) target = $region9
    $region8: #{tpu_custom_call.1} parent=1 // pred_region
      %31 = dma.done [#allocation5], 256
    $region9: #{tpu_custom_call.1} parent=1 // pred_fallthru
      _
    %s32 = sld [smem:[#allocation3]]
    %s33 = sld [smem:[#allocation3 + $0x1]]
    %v34 = vld [vmem:[#allocation4] sm:$0xff]
    %v35 = vld [vmem:[#allocation4 + $0x8] sm:$0xff]
    %v36 = vstv %s33
    %v37 = vmul.f32 %v36, %v34
    %v38 = vmul.f32 %v36, %v35
    %v39 = vmul.f32 %v37, 1.442695
    %v40 = vpow.pop %v39
    %v41 = vmul.f32 %v38, 1.442695
    %v42 = vpow.pop %v41
    %v43 = vstv %s32
    %v44 = vmul.f32 %v43, %v40
    %v45 = vmul.f32 %v43, %v42
    %46 = vst [vmem:[#allocation7] sm:$0xff] %v44
    %47 = vst [vmem:[#allocation7 + $0x8] sm:$0xff] %v45
    // Predicated region
    $region10: #{tpu_custom_call.1} parent=1 // pred_check
      _
    $region11: #{tpu_custom_call.1} parent=1 // pred_check_branch
      %49 = sbr.rel (0) target = $region13
    $region12: #{tpu_custom_call.1} parent=1 // pred_region
      %51 = vsyncadd [#allocation6], 0
      %s53 = sshll.u32 [#allocation7], 4
      %s54 = int_to_ptr.vmem [resolvable:$true] %s53
      %s55 = sshll.u32 %s2, 4
      %s56 = int_to_ptr.hbm [resolvable:$true] %s55
      %58 = dma.vmem_to_hbm [thread:$0]  %s54, 256, %s56, [#allocation6]
    $region13: #{tpu_custom_call.1} parent=1 // pred_fallthru
      _
    // Predicated region
    $region14: #{tpu_custom_call.1} parent=1 // pred_check
      _
    $region15: #{tpu_custom_call.1} parent=1 // pred_check_branch
      %60 = sbr.rel (0) target = $region17
    $region16: #{tpu_custom_call.1} parent=1 // pred_region
      %62 = dma.done [#allocation6], 256
    $region17: #{tpu_custom_call.1} parent=1 // pred_fallthru
      _
    %63 = vsyncpa [#allocation5], 1
    %64 = vsyncpa [#allocation6], 1

</llo_original>
